<compile_context>
chip_gen: v7x
topology: tpu7x:2x2x1
jax: 0.10.0
libtpu: 0.0.40
codegen_flags: <defaults>
</compile_context>

<pallas_src>
import functools

import jax
import jax.numpy as jnp
from jax.experimental import pallas as pl
from jax.experimental.pallas import tpu as pltpu


def _nmf_decoder_kernel(w_ref, h_ref, o_ref):
    # w_ref: (n_freq, n_comp)  VMEM tile, resident across the grid
    # h_ref: (1, n_comp, tT)   VMEM tile (one batch element, one time tile)
    # o_ref: (1, n_freq, tT)   VMEM tile
    w = jnp.maximum(w_ref[...], 0.0)   # ReLU(W)  -- VPU (hidden under DMA)
    h = jnp.maximum(h_ref[0], 0.0)     # ReLU(H)  -- VPU
    out = jnp.dot(w, h, preferred_element_type=jnp.float32)  # MXU, f32 acc
    o_ref[0] = out.astype(o_ref.dtype)


@functools.partial(jax.jit, static_argnames=("t_tile",))
def nmf_decoder_audio(H, W, *, t_tile=512):
    """Pallas implementation of NMFDecoderAudio.forward.

    Args:
      H: (B, n_comp, T) activations (float32 or bfloat16).
      W: (n_freq, n_comp) NMF dictionary.
      t_tile: time-tile width; must be a multiple of 128.

    Returns:
      (B, n_freq, T) array of H.dtype, = relu(W) @ relu(H) per batch element.
    """
    assert t_tile % 128 == 0, "t_tile must be lane-aligned (multiple of 128)"
    B, n_comp, T = H.shape
    n_freq, n_comp_w = W.shape
    assert n_comp == n_comp_w

    # Keep one dtype on the MXU (W is tiny; casting it is negligible).
    if W.dtype != H.dtype:
        W = W.astype(H.dtype)

    # Lane-dense time tiling: pad T to a multiple of tT (>= multiple of 128).
    t_lane = pl.cdiv(T, 128) * 128
    tT = min(t_tile, t_lane)
    T_pad = pl.cdiv(T, tT) * tT
    if T_pad != T:
        H = jnp.pad(H, ((0, 0), (0, 0), (0, T_pad - T)))
    n_t = T_pad // tT

    # VMEM budget: double-buffered H tile + out tile + (resident) W tile.
    itemsize = jnp.dtype(H.dtype).itemsize
    vmem_need = 2 * (n_comp * tT + n_freq * tT + n_freq * n_comp) * itemsize
    vmem_limit = int(min(max(2 * vmem_need, 4 * 1024 * 1024), 32 * 1024 * 1024))

    out = pl.pallas_call(
        _nmf_decoder_kernel,
        out_shape=jax.ShapeDtypeStruct((B, n_freq, T_pad), H.dtype),
        grid_spec=pltpu.PrefetchScalarGridSpec(
            num_scalar_prefetch=0,
            grid=(B, n_t),
            in_specs=[
                # W shared across the whole grid: constant block index.
                pl.BlockSpec((n_freq, n_comp), lambda b, t: (0, 0)),
                # One (batch, time-tile) slab of H per step.
                pl.BlockSpec((1, n_comp, tT), lambda b, t: (b, 0, t)),
            ],
            out_specs=pl.BlockSpec((1, n_freq, tT), lambda b, t: (b, 0, t)),
        ),
        compiler_params=pltpu.CompilerParams(
            # No reduction axis (n_comp is fully inside the block).
            dimension_semantics=("parallel", "parallel"),
            vmem_limit_bytes=vmem_limit,
        ),
    )(W, H)

    if T_pad != T:
        out = out[:, :, :T]
    return out


def _reference(H, W):
    return jnp.einsum(
        "ij,bjk->bik", jnp.maximum(W, 0.0), jnp.maximum(H, 0.0)
    )


if __name__ == "__main__":
    # Small shapes from the module docstring example (NMFDecoderAudio(20, 210)).
    B, n_comp, n_freq, T = 2, 20, 210, 150

    key = jax.random.PRNGKey(0)
    k_h, k_w = jax.random.split(key)

    # W follows the module init: 0.1 * uniform(n_freq, n_comp).
    W = 0.1 * jax.random.uniform(k_w, (n_freq, n_comp), dtype=jnp.float32)
    # H: normal so the ReLU on H is actually exercised.
    H = jax.random.normal(k_h, (B, n_comp, T), dtype=jnp.float32)

    # --- float32 path ---
    out = jax.block_until_ready(nmf_decoder_audio(H, W))
    ref = _reference(H, W)
    assert out.shape == (B, n_freq, T), out.shape
    assert jnp.allclose(out, ref, atol=1e-5, rtol=1e-5), "f32 mismatch vs reference"

    # --- bfloat16 I/O path (halves HBM traffic for this mem-bound kernel) ---
    H16 = H.astype(jnp.bfloat16)
    W16 = W.astype(jnp.bfloat16)
    out16 = jax.block_until_ready(nmf_decoder_audio(H16, W16))
    ref16 = _reference(H16.astype(jnp.float32), W16.astype(jnp.float32))
    assert out16.shape == (B, n_freq, T)
    assert out16.dtype == jnp.bfloat16
    assert jnp.allclose(out16.astype(jnp.float32), ref16, atol=2e-2, rtol=2e-2), (
        "bf16 mismatch vs reference"
    )

    print("KERNEL_OK")
</pallas_src>

<mosaic_0001>
module attributes {stable_mosaic.version = 11 : i64} {
  func.func @_nmf_decoder_kernel(%arg0: i32, %arg1: i32, %arg2: memref<210x20xf32, #tpu.memory_space<vmem>>, %arg3: memref<1x20x256xf32, #tpu.memory_space<vmem>>, %arg4: memref<1x210x256xf32, #tpu.memory_space<vmem>>) attributes {dimension_semantics = [#tpu.dimension_semantics<parallel>, #tpu.dimension_semantics<parallel>], iteration_bounds = array<i64: 2, 1>, scalar_prefetch = 0 : i64, scratch_operands = 0 : i64, tpu.core_type = #tpu.core_type<tc>, window_params = [{pipeline_mode = #tpu.pipeline_mode<synchronous>, transform_indices = @transform_0, window_bounds = array<i64: 210, 20>}, {transform_indices = @transform_1, window_bounds = array<i64: 1, 20, 256>}, {transform_indices = @transform_2, window_bounds = array<i64: 1, 210, 256>}]} {
    %c0 = arith.constant 0 : index
    %c0_0 = arith.constant 0 : index
    %0 = vector.load %arg2[%c0, %c0_0] : memref<210x20xf32, #tpu.memory_space<vmem>>, vector<210x20xf32>
    %cst = arith.constant 0.000000e+00 : f32
    %1 = vector.broadcast %cst : f32 to vector<210x20xf32>
    %2 = arith.maximumf %0, %1 : vector<210x20xf32>
    %c0_1 = arith.constant 0 : index
    %c0_2 = arith.constant 0 : index
    %c0_3 = arith.constant 0 : index
    %3 = vector.load %arg3[%c0_1, %c0_2, %c0_3] : memref<1x20x256xf32, #tpu.memory_space<vmem>>, vector<1x20x256xf32>
    %4 = vector.shape_cast %3 : vector<1x20x256xf32> to vector<20x256xf32>
    %cst_4 = arith.constant 0.000000e+00 : f32
    %5 = vector.broadcast %cst_4 : f32 to vector<20x256xf32>
    %6 = arith.maximumf %4, %5 : vector<20x256xf32>
    %cst_5 = arith.constant dense<0.000000e+00> : vector<210x256xf32>
    %7 = tpu.matmul %2, %6, %cst_5 {dimension_numbers = #tpu.dot_dimension_numbers<[1], [0], [0], [1], [0, 0, 1, 1], [], []>} : vector<210x20xf32>, vector<20x256xf32>, vector<210x256xf32> -> vector<210x256xf32>
    %c0_6 = arith.constant 0 : index
    %c0_7 = arith.constant 0 : index
    %c0_8 = arith.constant 0 : index
    %8 = vector.load %arg4[%c0_6, %c0_7, %c0_8] : memref<1x210x256xf32, #tpu.memory_space<vmem>>, vector<1x210x256xf32>
    %9 = vector.shape_cast %8 : vector<1x210x256xf32> to vector<210x256xf32>
    %10 = vector.shape_cast %7 : vector<210x256xf32> to vector<1x210x256xf32>
    tpu.vector_store %arg4[%c0_6, %c0_7, %c0_8], %10 {strides = array<i32>} : memref<1x210x256xf32, #tpu.memory_space<vmem>>, vector<1x210x256xf32>,
    return
  }
  func.func @transform_0(%arg0: i32, %arg1: i32) -> (i32, i32) {
    %c0_i32 = arith.constant 0 : i32
    %c0_i32_0 = arith.constant 0 : i32
    %c0_i32_1 = arith.constant 0 : i32
    return %c0_i32, %c0_i32_0 : i32, i32
  }
  func.func @transform_1(%arg0: i32, %arg1: i32) -> (i32, i32, i32) {
    %c0_i32 = arith.constant 0 : i32
    %c0_i32_0 = arith.constant 0 : i32
    return %arg0, %c0_i32, %arg1 : i32, i32, i32
  }
  func.func @transform_2(%arg0: i32, %arg1: i32) -> (i32, i32, i32) {
    %c0_i32 = arith.constant 0 : i32
    %c0_i32_0 = arith.constant 0 : i32
    return %arg0, %c0_i32, %arg1 : i32, i32, i32
  }
}

</mosaic_0001>

<llo_original>
// kernel: nmf_decoder_audio.1
$region0: #{nmf_decoder_audio.1}
  #allocation0 [shape = 'u32[]', space=smem, size = 0x4, offset = 0x4, fixed_abs, tag = 'smem constant byte address 0x4 - core index']
  #allocation1 [shape = 'u32[144,128]{1,0:T(1,128)}', space=vmem, size = 0x12000, scoped, tag = 'internal scratch']
  %s0 = inlined_call_operand.vmem [shape: f32[210,20], index: 0, kind: input, shape index: {}]
  %s1 = inlined_call_operand.vmem [shape: f32[2,20,256], index: 1, kind: input, shape index: {}]
  %s2 = inlined_call_operand.vmem [shape: f32[2,210,256], index: 2, kind: output, shape index: {}]
  %s3 = sld [smem:[#allocation0]]
  $region41: #{nmf_decoder_audio.1} parent=0
    _
  %s5 = ssub.s32 1, %s3
  %s6 = scalar_select 0, %s5, %s3
  loop: start=0, step=1, limit=4
  $region2: #{nmf_decoder_audio.1} parent=0 // loop_pre_header
    _
  $region3: #{nmf_decoder_audio.1} parent=0 // loop_header
    %s8 = sphi 0, %s12
    %p9 = scmp.ge.s32.totalorder %s8, 4
    %s15 = sphi 0, %s27
    %s16 = sphi 0, %s23
    %s17 = sphi 0, %s15
    %s18 = sphi 0, %s16
    %s19 = sphi 0, %s17
    %s20 = sphi 0, %s18
    %s28 = sphi 0, %s28
    %s30 = sphi 0, %s28
    %s31 = sphi 0, %s30
    %s45 = sphi 0, %s31
    %s53 = sphi 0, %s55
    %s56 = sphi 0, %s53
    %s57 = sphi 0, %s56
    %s73 = sphi 0, %s57
    %s81 = sphi 0, %s83
    %s84 = sphi 0, %s81
    %s85 = sphi 0, %s84
    %s101 = sphi 0, %s85
  $region4: #{nmf_decoder_audio.1} parent=0 // loop_header_branch
    %11 = sbr.rel (%p9) target = $region8
  $region5: #{nmf_decoder_audio.1} parent=0 // loop_body
    %s13 = ssub.s32 %s8, 1
    %s14 = ssub.s32 %s8, 2
    %s21 = sadd.s32 1, %s16
    %p22 = scmp.ge.s32.totalorder %s21, 1
    %s23 = scalar_select %p22, 0, %s21
    %s24 = sadd.s32 1, %s15
    %s25 = scalar_select %p22, %s24, %s15
    %p26 = scmp.ge.s32.totalorder %s25, 2
    %s27 = scalar_select %p26, 0, %s25
    %s29 = sadd.s32 %s28, 1
    %p32 = scmp.eq.s32.totalorder %s8, 1
    %p33 = scmp.ne.s32.totalorder %s28, %s30
    %p34 = scmp.eq.s32.totalorder %s8, 0
    %p35 = por %p33, %p34
    %p36 = scmp.ne.s32.totalorder %s28, %s30
    %p37 = scmp.eq.s32.totalorder %s13, 1
    %p38 = por %p36, %p37
    %p39 = scmp.ne.s32.totalorder %s30, %s31
    %p40 = scmp.eq.s32.totalorder %s13, 0
    %p41 = por %p39, %p40
    %p42 = scmp.ne.s32.totalorder %s30, %s31
    %p43 = scmp.eq.s32.totalorder %s14, 1
    %p44 = por %p42, %p43
    %p46 = scmp.ne.s32.totalorder %s31, %s45
    %p47 = scmp.eq.s32.totalorder %s14, 0
    %p48 = por %p46, %p47
    %s49 = ssub.s32 %s15, %s27
    %s50 = ssub.s32 %s16, %s23
    %s51 = sor.u32 %s49, %s50
    %p52 = scmp.eq.s32.totalorder %s51, 0
    %s54 = sadd.s32 %s53, 1
    %s55 = scalar_select %p52, %s53, %s54
    %p58 = pneg %p52
    %p59 = scmp.eq.s32.totalorder %s8, 1
    %p60 = por %p58, %p59
    %p61 = scmp.ne.s32.totalorder %s53, %s56
    %p62 = scmp.eq.s32.totalorder %s8, 0
    %p63 = por %p61, %p62
    %p64 = scmp.ne.s32.totalorder %s53, %s56
    %p65 = scmp.eq.s32.totalorder %s13, 1
    %p66 = por %p64, %p65
    %p67 = scmp.ne.s32.totalorder %s56, %s57
    %p68 = scmp.eq.s32.totalorder %s13, 0
    %p69 = por %p67, %p68
    %p70 = scmp.ne.s32.totalorder %s56, %s57
    %p71 = scmp.eq.s32.totalorder %s14, 1
    %p72 = por %p70, %p71
    %p74 = scmp.ne.s32.totalorder %s57, %s73
    %p75 = scmp.eq.s32.totalorder %s14, 0
    %p76 = por %p74, %p75
    %s77 = ssub.s32 %s15, %s27
    %s78 = ssub.s32 %s16, %s23
    %s79 = sor.u32 %s77, %s78
    %p80 = scmp.eq.s32.totalorder %s79, 0
    %s82 = sadd.s32 %s81, 1
    %s83 = scalar_select %p80, %s81, %s82
    %p86 = pneg %p80
    %p87 = scmp.eq.s32.totalorder %s8, 1
    %p88 = por %p86, %p87
    %p89 = scmp.ne.s32.totalorder %s81, %s84
    %p90 = scmp.eq.s32.totalorder %s8, 0
    %p91 = por %p89, %p90
    %p92 = scmp.ne.s32.totalorder %s81, %s84
    %p93 = scmp.eq.s32.totalorder %s13, 1
    %p94 = por %p92, %p93
    %p95 = scmp.ne.s32.totalorder %s84, %s85
    %p96 = scmp.eq.s32.totalorder %s13, 0
    %p97 = por %p95, %p96
    %p98 = scmp.ne.s32.totalorder %s84, %s85
    %p99 = scmp.eq.s32.totalorder %s14, 1
    %p100 = por %p98, %p99
    %p102 = scmp.ne.s32.totalorder %s85, %s101
    %p103 = scmp.eq.s32.totalorder %s14, 0
    %p104 = por %p102, %p103
    %p105 = scmp.le.s32.totalorder 1, %s8
    %p106 = scmp.lt.s32.totalorder %s8, 3
    %p107 = pnand %p105, %p106
    %p108 = pneg %p107
    // Predicated region
    $region9: #{nmf_decoder_audio.1} parent=5 // pred_check
      _
    $region10: #{nmf_decoder_audio.1} parent=5 // pred_check_branch
      %110 = sbr.rel (%p107) target = $region12
    $region11: #{nmf_decoder_audio.1} parent=5 // pred_region
      %s111 = ssub.s32 %s8, 1
      // Predicated region
      $region13: #{nmf_decoder_audio.1} parent=11 // pred_check
        %p112 = pneg %p41
      $region14: #{nmf_decoder_audio.1} parent=11 // pred_check_branch
        %114 = sbr.rel (%p112) target = $region16
      $region15: #{nmf_decoder_audio.1} parent=11 // pred_region
        _
      $region16: #{nmf_decoder_audio.1} parent=11 // pred_fallthru
        _
    $region12: #{nmf_decoder_audio.1} parent=5 // pred_fallthru
      _
    %p115 = scmp.lt.s32.totalorder %s8, 2
    // Predicated region
    $region17: #{nmf_decoder_audio.1} parent=5 // pred_check
      %p116 = pneg %p115
    $region18: #{nmf_decoder_audio.1} parent=5 // pred_check_branch
      %118 = sbr.rel (%p116) target = $region20
    $region19: #{nmf_decoder_audio.1} parent=5 // pred_region
      // Predicated region
      $region21: #{nmf_decoder_audio.1} parent=19 // pred_check
        %p119 = pneg %p63
      $region22: #{nmf_decoder_audio.1} parent=19 // pred_check_branch
        %121 = sbr.rel (%p119) target = $region24
      $region23: #{nmf_decoder_audio.1} parent=19 // pred_region
        %s122 = smul.u32 2, %s16
        %p123 = scmp.lt.s32.totalorder %s15, 1
        %s124 = scalar_select %p123, %s15, 1
        %p125 = scmp.lt.s32.totalorder %s122, 1
        %s126 = scalar_select %p125, %s122, 1
        %s127 = smul.addr %s124, 6
        %s128 = sadd.s32 %s126, %s127
        %s129 = smul.addr %s128, 8
        %s130 = scalar_lea.vmem %s1, %s129
        %s131 = smul.u32 2, %s16
      $region24: #{nmf_decoder_audio.1} parent=19 // pred_fallthru
        _
    $region20: #{nmf_decoder_audio.1} parent=5 // pred_fallthru
      _
    %p132 = scmp.le.s32.totalorder 1, %s8
    %p133 = scmp.lt.s32.totalorder %s8, 3
    %p134 = pnand %p132, %p133
    %p135 = pneg %p134
    // Predicated region
    $region25: #{nmf_decoder_audio.1} parent=5 // pred_check
      _
    $region26: #{nmf_decoder_audio.1} parent=5 // pred_check_branch
      %137 = sbr.rel (%p134) target = $region28
    $region27: #{nmf_decoder_audio.1} parent=5 // pred_region
      %s138 = ssub.s32 %s8, 1
      %p139 = pneg %p41
      %p140 = pneg %p38
      %s141 = smul.u32 2, %s18
      %p142 = scmp.lt.s32.totalorder %s17, 1
      %s143 = scalar_select %p142, %s17, 1
      %p144 = scmp.lt.s32.totalorder %s141, 1
      %s145 = scalar_select %p144, %s141, 1
      %s146 = smul.addr %s143, 6
      %s147 = sadd.s32 %s145, %s146
      %s148 = smul.addr %s147, 8
      %s149 = scalar_lea.vmem %s1, %s148
      %p150 = pneg %p69
      %p151 = pneg %p66
      %p152 = pneg %p97
      %p153 = pneg %p94
      %s154 = smul.u32 2, %s18
      %p155 = scmp.lt.s32.totalorder %s17, 1
      %s156 = scalar_select %p155, %s17, 1
      %p157 = scmp.lt.s32.totalorder %s154, 1
      %s158 = scalar_select %p157, %s154, 1
      %s159 = smul.addr %s156, 54
      %s160 = sadd.s32 %s158, %s159
      %s161 = smul.addr %s160, 8
      %s162 = scalar_lea.vmem %s2, %s161
      %s163 = smul.u32 2, %s18
      %p164 = scmp.lt.s32.totalorder %s17, 1
      %s165 = scalar_select %p164, %s17, 1
      %p166 = scmp.lt.s32.totalorder %s163, 1
      %s167 = scalar_select %p166, %s163, 1
      %s168 = smul.addr %s165, 6
      %s169 = sadd.s32 %s167, %s168
      %s170 = smul.addr %s169, 8
      %s171 = scalar_lea.vmem %s1, %s170
      %s172 = smul.u32 2, %s18
      %s173 = smul.u32 2, %s18
      %p174 = scmp.lt.s32.totalorder %s17, 1
      %s175 = scalar_select %p174, %s17, 1
      %p176 = scmp.lt.s32.totalorder %s173, 1
      %s177 = scalar_select %p176, %s173, 1
      %s178 = smul.addr %s175, 54
      %s179 = sadd.s32 %s177, %s178
      %s180 = smul.addr %s179, 8
      %s181 = scalar_lea.vmem %s2, %s180
      %s182 = smul.u32 2, %s18
      %v183 = vld [vmem:[%s0] sm:$0xff]
      %v184 = vld [vmem:[%s0 + $0x8] sm:$0xff]
      %v185 = vld [vmem:[%s0 + $0x10] sm:$0xff]
      %v186 = vld [vmem:[%s0 + $0x18] sm:$0xff]
      %v187 = vld [vmem:[%s0 + $0x20] sm:$0xff]
      %v188 = vld [vmem:[%s0 + $0x28] sm:$0xff]
      %v189 = vld [vmem:[%s0 + $0x30] sm:$0xff]
      %v190 = vld [vmem:[%s0 + $0x38] sm:$0xff]
      %v191 = vld [vmem:[%s0 + $0x40] sm:$0xff]
      %v192 = vld [vmem:[%s0 + $0x48] sm:$0xff]
      %v193 = vld [vmem:[%s0 + $0x50] sm:$0xff]
      %v194 = vld [vmem:[%s0 + $0x58] sm:$0xff]
      %v195 = vld [vmem:[%s0 + $0x60] sm:$0xff]
      %v196 = vld [vmem:[%s0 + $0x68] sm:$0xff]
      %v197 = vld [vmem:[%s0 + $0x70] sm:$0xff]
      %v198 = vld [vmem:[%s0 + $0x78] sm:$0xff]
      %v199 = vld [vmem:[%s0 + $0x80] sm:$0xff]
      %v200 = vld [vmem:[%s0 + $0x88] sm:$0xff]
      %v201 = vld [vmem:[%s0 + $0x90] sm:$0xff]
      %v202 = vld [vmem:[%s0 + $0x98] sm:$0xff]
      %v203 = vld [vmem:[%s0 + $0xa0] sm:$0xff]
      %v204 = vld [vmem:[%s0 + $0xa8] sm:$0xff]
      %v205 = vld [vmem:[%s0 + $0xb0] sm:$0xff]
      %v206 = vld [vmem:[%s0 + $0xb8] sm:$0xff]
      %v207 = vld [vmem:[%s0 + $0xc0] sm:$0xff]
      %v208 = vld [vmem:[%s0 + $0xc8] sm:$0xff]
      %v209 = vld [vmem:[%s0 + $0xd0] sm:$0x3]
      %v210 = vmax.f32 %v183, 0.0
      %v211 = vmax.f32 %v184, 0.0
      %v212 = vmax.f32 %v185, 0.0
      %v213 = vmax.f32 %v186, 0.0
      %v214 = vmax.f32 %v187, 0.0
      %v215 = vmax.f32 %v188, 0.0
      %v216 = vmax.f32 %v189, 0.0
      %v217 = vmax.f32 %v190, 0.0
      %v218 = vmax.f32 %v191, 0.0
      %v219 = vmax.f32 %v192, 0.0
      %v220 = vmax.f32 %v193, 0.0
      %v221 = vmax.f32 %v194, 0.0
      %v222 = vmax.f32 %v195, 0.0
      %v223 = vmax.f32 %v196, 0.0
      %v224 = vmax.f32 %v197, 0.0
      %v225 = vmax.f32 %v198, 0.0
      %v226 = vmax.f32 %v199, 0.0
      %v227 = vmax.f32 %v200, 0.0
      %v228 = vmax.f32 %v201, 0.0
      %v229 = vmax.f32 %v202, 0.0
      %v230 = vmax.f32 %v203, 0.0
      %v231 = vmax.f32 %v204, 0.0
      %v232 = vmax.f32 %v205, 0.0
      %v233 = vmax.f32 %v206, 0.0
      %v234 = vmax.f32 %v207, 0.0
      %v235 = vmax.f32 %v208, 0.0
      %v236 = vmax.f32 %v209, 0.0
      %v237 = vld [vmem:[%s171] sm:$0xff]
      %v238 = vld [vmem:[%s171 + $0x8] sm:$0xff]
      %v239 = vld [vmem:[%s171 + $0x10] sm:$0xff]
      %v240 = vld [vmem:[%s171 + $0x18] sm:$0xff]
      %v241 = vld [vmem:[%s171 + $0x20] sm:$0xf]
      %v242 = vld [vmem:[%s171 + $0x28] sm:$0xf]
      %v243 = vmax.f32 %v237, 0.0
      %v244 = vmax.f32 %v238, 0.0
      %v245 = vmax.f32 %v239, 0.0
      %v246 = vmax.f32 %v240, 0.0
      %v247 = vmax.f32 %v241, 0.0
      %v248 = vmax.f32 %v242, 0.0
      %vm249 = vcmask 162816
      %v251 = vsel %vm249, %v210, 0
      %v254 = vsel %vm249, %v211, 0
      %v257 = vsel %vm249, %v212, 0
      %v260 = vsel %vm249, %v213, 0
      %v263 = vsel %vm249, %v214, 0
      %v266 = vsel %vm249, %v215, 0
      %v269 = vsel %vm249, %v216, 0
      %v272 = vsel %vm249, %v217, 0
      %v275 = vsel %vm249, %v218, 0
      %v278 = vsel %vm249, %v219, 0
      %v281 = vsel %vm249, %v220, 0
      %v284 = vsel %vm249, %v221, 0
      %v287 = vsel %vm249, %v222, 0
      %v290 = vsel %vm249, %v223, 0
      %v293 = vsel %vm249, %v224, 0
      %v296 = vsel %vm249, %v225, 0
      %v299 = vsel %vm249, %v226, 0
      %v302 = vsel %vm249, %v227, 0
      %v305 = vsel %vm249, %v228, 0
      %v308 = vsel %vm249, %v229, 0
      %v311 = vsel %vm249, %v230, 0
      %v314 = vsel %vm249, %v231, 0
      %v317 = vsel %vm249, %v232, 0
      %v320 = vsel %vm249, %v233, 0
      %v323 = vsel %vm249, %v234, 0
      %v326 = vsel %vm249, %v235, 0
      %v329 = vsel %vm249, %v236, 0
      %vm331 = vcmask 1043456
      %v333 = vsel %vm331, %v247, 0
      %v336 = vsel %vm331, %v248, 0
      %338 = vmatprep.subr.mxu0 %v244
      %339 = vmatpush1.msra.mxu0 %v243
      %340 = vmatprep.subr.mxu0 %v246
      %341 = vmatpush1.msra.mxu0 %v245
      %342 = vmatprep.subr.mxu0 %v336
      %343 = vmatpush1.msra.mxu0 %v333
      %344 = vmatprep.subr.mxu0 0.0
      %345 = vmatpush1.msra.mxu0 0.0
      %346 = vmatprep.subr.mxu0 0.0
      %347 = vmatpush1.msra.mxu0 0.0
      %348 = vmatprep.subr.mxu0 0.0
      %349 = vmatpush1.msra.mxu0 0.0
      %350 = vmatprep.subr.mxu0 0.0
      %351 = vmatpush1.msra.mxu0 0.0
      %352 = vmatprep.subr.mxu0 0.0
      %353 = vmatpush1.msra.mxu0 0.0
      %354 = vmatprep.subr.mxu0 0.0
      %355 = vmatpush1.msra.mxu0 0.0
      %356 = vmatprep.subr.mxu0 0.0
      %357 = vmatpush1.msra.mxu0 0.0
      %358 = vmatprep.subr.mxu0 0.0
      %359 = vmatpush1.msra.mxu0 0.0
      %360 = vmatprep.subr.mxu0 0.0
      %361 = vmatpush1.msra.mxu0 0.0
      %362 = vmatprep.subr.mxu0 0.0
      %363 = vmatpush1.msra.mxu0 0.0
      %364 = vmatprep.subr.mxu0 0.0
      %365 = vmatpush1.msra.mxu0 0.0
      %366 = vmatprep.subr.mxu0 0.0
      %367 = vmatpush1.msra.mxu0 0.0
      %368 = vmatprep.subr.mxu0 0.0
      %369 = vmatpush1.msra.mxu0 0.0
      %370 = vmatprep.subr.mxu0 0.0
      %371 = vmatpush1.msra.mxu0 0.0
      %372 = vmatprep.subr.mxu0 0.0
      %373 = vmatpush1.msra.mxu0 0.0
      %374 = vmatprep.subr.mxu0 0.0
      %375 = vmatpush1.msra.mxu0 0.0
      %376 = vmatprep.subr.mxu0 0.0
      %377 = vmatpush1.msra.mxu0 0.0
      %378 = vmatprep.subr.mxu0 0.0
      %379 = vmatpush1.msra.mxu0 0.0
      %380 = vmatprep.subr.mxu0 0.0
      %381 = vmatpush1.msra.mxu0 0.0
      %382 = vmatprep.subr.mxu0 0.0
      %383 = vmatpush1.msra.mxu0 0.0
      %384 = vmatprep.subr.mxu0 0.0
      %385 = vmatpush1.msra.mxu0 0.0
      %386 = vmatprep.subr.mxu0 0.0
      %387 = vmatpush1.msra.mxu0 0.0
      %388 = vmatprep.subr.mxu0 0.0
      %389 = vmatpush1.msra.mxu0 0.0
      %390 = vmatprep.subr.mxu0 0.0
      %391 = vmatpush1.msra.mxu0 0.0
      %392 = vmatprep.subr.mxu0 0.0
      %393 = vmatpush1.msra.mxu0 0.0
      %394 = vmatprep.subr.mxu0 0.0
      %395 = vmatpush1.msra.mxu0 0.0
      %396 = vmatprep.subr.mxu0 0.0
      %397 = vmatpush1.msra.mxu0 0.0
      %398 = vmatprep.subr.mxu0 0.0
      %399 = vmatpush1.msra.mxu0 0.0
      %400 = vmatprep.subr.mxu0 0.0
      %401 = vmatpush1.msra.mxu0 0.0
      %402 = vmatprep.mubr.f32.mxu0 0.0
      %403 = vmatmul.mubr.f32.gmra.mrb[0].mxu0 %v251
      %v404 = vpop.f32.mrb[0].mxu0
      %v405 = vadd.f32 0.0, %v404
      %v406 = vpop.f32.mrb[0].mxu0
      %v407 = vadd.f32 0.0, %v406
      %408 = vmatprep.mubr.f32.mxu0 0.0
      %409 = vmatmul.mubr.f32.gmra.mrb[0].mxu0 %v254
      %v410 = vpop.f32.mrb[0].mxu0
      %v411 = vadd.f32 0.0, %v410
      %v412 = vpop.f32.mrb[0].mxu0
      %v413 = vadd.f32 0.0, %v412
      %414 = vmatprep.mubr.f32.mxu0 0.0
      %415 = vmatmul.mubr.f32.gmra.mrb[0].mxu0 %v257
      %v416 = vpop.f32.mrb[0].mxu0
      %v417 = vadd.f32 0.0, %v416
      %v418 = vpop.f32.mrb[0].mxu0
      %v419 = vadd.f32 0.0, %v418
      %420 = vmatprep.mubr.f32.mxu0 0.0
      %421 = vmatmul.mubr.f32.gmra.mrb[0].mxu0 %v260
      %v422 = vpop.f32.mrb[0].mxu0
      %v423 = vadd.f32 0.0, %v422
      %v424 = vpop.f32.mrb[0].mxu0
      %v425 = vadd.f32 0.0, %v424
      %426 = vmatprep.mubr.f32.mxu0 0.0
      %427 = vmatmul.mubr.f32.gmra.mrb[0].mxu0 %v263
      %v428 = vpop.f32.mrb[0].mxu0
      %v429 = vadd.f32 0.0, %v428
      %v430 = vpop.f32.mrb[0].mxu0
      %v431 = vadd.f32 0.0, %v430
      %432 = vmatprep.mubr.f32.mxu0 0.0
      %433 = vmatmul.mubr.f32.gmra.mrb[0].mxu0 %v266
      %v434 = vpop.f32.mrb[0].mxu0
      %v435 = vadd.f32 0.0, %v434
      %v436 = vpop.f32.mrb[0].mxu0
      %v437 = vadd.f32 0.0, %v436
      %438 = vmatprep.mubr.f32.mxu0 0.0
      %439 = vmatmul.mubr.f32.gmra.mrb[0].mxu0 %v269
      %v440 = vpop.f32.mrb[0].mxu0
      %v441 = vadd.f32 0.0, %v440
      %v442 = vpop.f32.mrb[0].mxu0
      %v443 = vadd.f32 0.0, %v442
      %444 = vmatprep.mubr.f32.mxu0 0.0
      %445 = vmatmul.mubr.f32.gmra.mrb[0].mxu0 %v272
      %v446 = vpop.f32.mrb[0].mxu0
      %v447 = vadd.f32 0.0, %v446
      %v448 = vpop.f32.mrb[0].mxu0
      %v449 = vadd.f32 0.0, %v448
      %450 = vmatprep.mubr.f32.mxu0 0.0
      %451 = vmatmul.mubr.f32.gmra.mrb[0].mxu0 %v275
      %v452 = vpop.f32.mrb[0].mxu0
      %v453 = vadd.f32 0.0, %v452
      %v454 = vpop.f32.mrb[0].mxu0
      %v455 = vadd.f32 0.0, %v454
      %456 = vmatprep.mubr.f32.mxu0 0.0
      %457 = vmatmul.mubr.f32.gmra.mrb[0].mxu0 %v278
      %v458 = vpop.f32.mrb[0].mxu0
      %v459 = vadd.f32 0.0, %v458
      %v460 = vpop.f32.mrb[0].mxu0
      %v461 = vadd.f32 0.0, %v460
      %462 = vmatprep.mubr.f32.mxu0 0.0
      %463 = vmatmul.mubr.f32.gmra.mrb[0].mxu0 %v281
      %v464 = vpop.f32.mrb[0].mxu0
      %v465 = vadd.f32 0.0, %v464
      %v466 = vpop.f32.mrb[0].mxu0
      %v467 = vadd.f32 0.0, %v466
      %468 = vmatprep.mubr.f32.mxu0 0.0
      %469 = vmatmul.mubr.f32.gmra.mrb[0].mxu0 %v284
      %v470 = vpop.f32.mrb[0].mxu0
      %v471 = vadd.f32 0.0, %v470
      %v472 = vpop.f32.mrb[0].mxu0
      %v473 = vadd.f32 0.0, %v472
      %474 = vmatprep.mubr.f32.mxu0 0.0
      %475 = vmatmul.mubr.f32.gmra.mrb[0].mxu0 %v287
      %v476 = vpop.f32.mrb[0].mxu0
      %v477 = vadd.f32 0.0, %v476
      %v478 = vpop.f32.mrb[0].mxu0
      %v479 = vadd.f32 0.0, %v478
      %480 = vmatprep.mubr.f32.mxu0 0.0
      %481 = vmatmul.mubr.f32.gmra.mrb[0].mxu0 %v290
      %v482 = vpop.f32.mrb[0].mxu0
      %v483 = vadd.f32 0.0, %v482
      %v484 = vpop.f32.mrb[0].mxu0
      %v485 = vadd.f32 0.0, %v484
      %486 = vmatprep.mubr.f32.mxu0 0.0
      %487 = vmatmul.mubr.f32.gmra.mrb[0].mxu0 %v293
      %v488 = vpop.f32.mrb[0].mxu0
      %v489 = vadd.f32 0.0, %v488
      %v490 = vpop.f32.mrb[0].mxu0
      %v491 = vadd.f32 0.0, %v490
      %492 = vmatprep.mubr.f32.mxu0 0.0
      %493 = vmatmul.mubr.f32.gmra.mrb[0].mxu0 %v296
      %v494 = vpop.f32.mrb[0].mxu0
      %v495 = vadd.f32 0.0, %v494
      %v496 = vpop.f32.mrb[0].mxu0
      %v497 = vadd.f32 0.0, %v496
      %498 = vmatprep.mubr.f32.mxu0 0.0
      %499 = vmatmul.mubr.f32.gmra.mrb[0].mxu0 %v299
      %v500 = vpop.f32.mrb[0].mxu0
      %v501 = vadd.f32 0.0, %v500
      %v502 = vpop.f32.mrb[0].mxu0
      %v503 = vadd.f32 0.0, %v502
      %504 = vmatprep.mubr.f32.mxu0 0.0
      %505 = vmatmul.mubr.f32.gmra.mrb[0].mxu0 %v302
      %v506 = vpop.f32.mrb[0].mxu0
      %v507 = vadd.f32 0.0, %v506
      %v508 = vpop.f32.mrb[0].mxu0
      %v509 = vadd.f32 0.0, %v508
      %510 = vmatprep.mubr.f32.mxu0 0.0
      %511 = vmatmul.mubr.f32.gmra.mrb[0].mxu0 %v305
      %v512 = vpop.f32.mrb[0].mxu0
      %v513 = vadd.f32 0.0, %v512
      %v514 = vpop.f32.mrb[0].mxu0
      %v515 = vadd.f32 0.0, %v514
      %516 = vmatprep.mubr.f32.mxu0 0.0
      %517 = vmatmul.mubr.f32.gmra.mrb[0].mxu0 %v308
      %v518 = vpop.f32.mrb[0].mxu0
      %v519 = vadd.f32 0.0, %v518
      %v520 = vpop.f32.mrb[0].mxu0
      %v521 = vadd.f32 0.0, %v520
      %522 = vmatprep.mubr.f32.mxu0 0.0
      %523 = vmatmul.mubr.f32.gmra.mrb[0].mxu0 %v311
      %v524 = vpop.f32.mrb[0].mxu0
      %v525 = vadd.f32 0.0, %v524
      %v526 = vpop.f32.mrb[0].mxu0
      %v527 = vadd.f32 0.0, %v526
      %528 = vmatprep.mubr.f32.mxu0 0.0
      %529 = vmatmul.mubr.f32.gmra.mrb[0].mxu0 %v314
      %v530 = vpop.f32.mrb[0].mxu0
      %v531 = vadd.f32 0.0, %v530
      %v532 = vpop.f32.mrb[0].mxu0
      %v533 = vadd.f32 0.0, %v532
      %534 = vmatprep.mubr.f32.mxu0 0.0
      %535 = vmatmul.mubr.f32.gmra.mrb[0].mxu0 %v317
      %v536 = vpop.f32.mrb[0].mxu0
      %v537 = vadd.f32 0.0, %v536
      %v538 = vpop.f32.mrb[0].mxu0
      %v539 = vadd.f32 0.0, %v538
      %540 = vmatprep.mubr.f32.mxu0 0.0
      %541 = vmatmul.mubr.f32.gmra.mrb[0].mxu0 %v320
      %v542 = vpop.f32.mrb[0].mxu0
      %v543 = vadd.f32 0.0, %v542
      %v544 = vpop.f32.mrb[0].mxu0
      %v545 = vadd.f32 0.0, %v544
      %546 = vmatprep.mubr.f32.mxu0 0.0
      %547 = vmatmul.mubr.f32.gmra.mrb[0].mxu0 %v323
      %v548 = vpop.f32.mrb[0].mxu0
      %v549 = vadd.f32 0.0, %v548
      %v550 = vpop.f32.mrb[0].mxu0
      %v551 = vadd.f32 0.0, %v550
      %552 = vmatprep.mubr.f32.mxu0 0.0
      %553 = vmatmul.mubr.f32.gmra.mrb[0].mxu0 %v326
      %v554 = vpop.f32.mrb[0].mxu0
      %v555 = vadd.f32 0.0, %v554
      %v556 = vpop.f32.mrb[0].mxu0
      %v557 = vadd.f32 0.0, %v556
      %558 = vmatprep.mubr.f32.mxu0 0.0
      %559 = vmatmul.mubr.f32.gmra.mrb[0].mxu0 %v329
      %v560 = vpop.f32.mrb[0].mxu0
      %v561 = vadd.f32 0.0, %v560
      %v562 = vpop.f32.mrb[0].mxu0
      %v563 = vadd.f32 0.0, %v562
      %564 = vdwg.mxu0
      %565 = vst [vmem:[%s181] sm:$0xff] %v405
      %566 = vst [vmem:[%s181 + $0x8] sm:$0xff] %v407
      %567 = vst [vmem:[%s181 + $0x10] sm:$0xff] %v411
      %568 = vst [vmem:[%s181 + $0x18] sm:$0xff] %v413
      %569 = vst [vmem:[%s181 + $0x20] sm:$0xff] %v417
      %570 = vst [vmem:[%s181 + $0x28] sm:$0xff] %v419
      %571 = vst [vmem:[%s181 + $0x30] sm:$0xff] %v423
      %572 = vst [vmem:[%s181 + $0x38] sm:$0xff] %v425
      %573 = vst [vmem:[%s181 + $0x40] sm:$0xff] %v429
      %574 = vst [vmem:[%s181 + $0x48] sm:$0xff] %v431
      %575 = vst [vmem:[%s181 + $0x50] sm:$0xff] %v435
      %576 = vst [vmem:[%s181 + $0x58] sm:$0xff] %v437
      %577 = vst [vmem:[%s181 + $0x60] sm:$0xff] %v441
      %578 = vst [vmem:[%s181 + $0x68] sm:$0xff] %v443
      %579 = vst [vmem:[%s181 + $0x70] sm:$0xff] %v447
      %580 = vst [vmem:[%s181 + $0x78] sm:$0xff] %v449
      %581 = vst [vmem:[%s181 + $0x80] sm:$0xff] %v453
      %582 = vst [vmem:[%s181 + $0x88] sm:$0xff] %v455
      %583 = vst [vmem:[%s181 + $0x90] sm:$0xff] %v459
      %584 = vst [vmem:[%s181 + $0x98] sm:$0xff] %v461
      %585 = vst [vmem:[%s181 + $0xa0] sm:$0xff] %v465
      %586 = vst [vmem:[%s181 + $0xa8] sm:$0xff] %v467
      %587 = vst [vmem:[%s181 + $0xb0] sm:$0xff] %v471
      %588 = vst [vmem:[%s181 + $0xb8] sm:$0xff] %v473
      %589 = vst [vmem:[%s181 + $0xc0] sm:$0xff] %v477
      %590 = vst [vmem:[%s181 + $0xc8] sm:$0xff] %v479
      %591 = vst [vmem:[%s181 + $0xd0] sm:$0xff] %v483
      %592 = vst [vmem:[%s181 + $0xd8] sm:$0xff] %v485
      %593 = vst [vmem:[%s181 + $0xe0] sm:$0xff] %v489
      %594 = vst [vmem:[%s181 + $0xe8] sm:$0xff] %v491
      %595 = vst [vmem:[%s181 + $0xf0] sm:$0xff] %v495
      %596 = vst [vmem:[%s181 + $0xf8] sm:$0xff] %v497
      %597 = vst [vmem:[%s181 + $0x100] sm:$0xff] %v501
      %598 = vst [vmem:[%s181 + $0x108] sm:$0xff] %v503
      %599 = vst [vmem:[%s181 + $0x110] sm:$0xff] %v507
      %600 = vst [vmem:[%s181 + $0x118] sm:$0xff] %v509
      %601 = vst [vmem:[%s181 + $0x120] sm:$0xff] %v513
      %602 = vst [vmem:[%s181 + $0x128] sm:$0xff] %v515
      %603 = vst [vmem:[%s181 + $0x130] sm:$0xff] %v519
      %604 = vst [vmem:[%s181 + $0x138] sm:$0xff] %v521
      %605 = vst [vmem:[%s181 + $0x140] sm:$0xff] %v525
      %606 = vst [vmem:[%s181 + $0x148] sm:$0xff] %v527
      %607 = vst [vmem:[%s181 + $0x150] sm:$0xff] %v531
      %608 = vst [vmem:[%s181 + $0x158] sm:$0xff] %v533
      %609 = vst [vmem:[%s181 + $0x160] sm:$0xff] %v537
      %610 = vst [vmem:[%s181 + $0x168] sm:$0xff] %v539
      %611 = vst [vmem:[%s181 + $0x170] sm:$0xff] %v543
      %612 = vst [vmem:[%s181 + $0x178] sm:$0xff] %v545
      %613 = vst [vmem:[%s181 + $0x180] sm:$0xff] %v549
      %614 = vst [vmem:[%s181 + $0x188] sm:$0xff] %v551
      %615 = vst [vmem:[%s181 + $0x190] sm:$0xff] %v555
      %616 = vst [vmem:[%s181 + $0x198] sm:$0xff] %v557
      %617 = vst [vmem:[%s181 + $0x1a0] sm:$0x3] %v561
      %618 = vst [vmem:[%s181 + $0x1a8] sm:$0x3] %v563
      %s619 = smul.u32 2, %s18
      %p620 = scmp.lt.s32.totalorder %s17, 1
      %s621 = scalar_select %p620, %s17, 1
      %p622 = scmp.lt.s32.totalorder %s619, 1
      %s623 = scalar_select %p622, %s619, 1
      %s624 = smul.addr %s621, 54
      %s625 = sadd.s32 %s623, %s624
      %s626 = smul.addr %s625, 8
      %s627 = scalar_lea.vmem %s2, %s626
      // Predicated region
      $region29: #{nmf_decoder_audio.1} parent=27 // pred_check
        %p628 = pneg %p94
      $region30: #{nmf_decoder_audio.1} parent=27 // pred_check_branch
        %630 = sbr.rel (%p628) target = $region32
      $region31: #{nmf_decoder_audio.1} parent=27 // pred_region
        %s631 = smul.u32 2, %s18
      $region32: #{nmf_decoder_audio.1} parent=27 // pred_fallthru
        _
    $region28: #{nmf_decoder_audio.1} parent=5 // pred_fallthru
      _
    %p632 = scmp.le.s32.totalorder 2, %s8
    // Predicated region
    $region33: #{nmf_decoder_audio.1} parent=5 // pred_check
      %p633 = pneg %p632
    $region34: #{nmf_decoder_audio.1} parent=5 // pred_check_branch
      %635 = sbr.rel (%p633) target = $region36
    $region35: #{nmf_decoder_audio.1} parent=5 // pred_region
      %s636 = ssub.s32 %s8, 2
      // Predicated region
      $region37: #{nmf_decoder_audio.1} parent=35 // pred_check
        %p637 = pneg %p100
      $region38: #{nmf_decoder_audio.1} parent=35 // pred_check_branch
        %639 = sbr.rel (%p637) target = $region40
      $region39: #{nmf_decoder_audio.1} parent=35 // pred_region
        %s640 = smul.u32 2, %s20
        %p641 = scmp.lt.s32.totalorder %s19, 1
        %s642 = scalar_select %p641, %s19, 1
        %p643 = scmp.lt.s32.totalorder %s640, 1
        %s644 = scalar_select %p643, %s640, 1
        %s645 = smul.addr %s642, 54
        %s646 = sadd.s32 %s644, %s645
        %s647 = smul.addr %s646, 8
        %s648 = scalar_lea.vmem %s2, %s647
      $region40: #{nmf_decoder_audio.1} parent=35 // pred_fallthru
        _
    $region36: #{nmf_decoder_audio.1} parent=5 // pred_fallthru
      _
  $region6: #{nmf_decoder_audio.1} parent=0 // loop_footer
    %s12 = sadd.s32 1, %s8
  $region7: #{nmf_decoder_audio.1} parent=0 // loop_footer_branch
    %7 = sbr.rel target = $region3
  $region8: #{nmf_decoder_audio.1} parent=0 // loop_exit
    _

</llo_original>
